<compile_context>
chip_gen: v7x
topology: tpu7x:2x2x1
jax: 0.10.0
libtpu: 0.0.40
codegen_flags: <defaults>
</compile_context>

<pallas_src>
import functools

import jax
import jax.numpy as jnp
from jax import lax
from jax.experimental import pallas as pl
from jax.experimental.pallas import tpu as pltpu


def _round_up(x, m):
    return (x + m - 1) // m * m


def _sampler_kernel(od_ref, pts_ref, *, n_pts, min_depth, max_depth):
    """od_ref: (R, 6) = [ox, oy, oz, dx, dy, dz] per ray.

    pts_ref: (R, 3*P), lane l = 3*p + c holds component c of the p-th sample:
             o_c + z_p * d_c  -> reshaping (N, 3P) to (N*P, 3) is free.
    """
    P = n_pts
    W = 3 * P
    step = (max_depth - min_depth) / (P - 1) if P > 1 else 0.0

    # Per-lane depth index p and component index c, computed once per step.
    lane = lax.broadcasted_iota(jnp.int32, (1, W), 1).astype(jnp.float32)  # (1, W)
    p_idx = jnp.floor(lane / 3.0)            # exact for these small integers
    comp = lane - 3.0 * p_idx                # 0., 1., 2.
    z = min_depth + step * p_idx             # (1, W) depth per lane, f32

    od = od_ref[...].astype(jnp.float32)     # (R, 6)
    ox, oy, oz = od[:, 0:1], od[:, 1:2], od[:, 2:3]
    dx, dy, dz = od[:, 3:4], od[:, 4:5], od[:, 5:6]

    # Three fused multiply-add planes + a select tree; kernel is HBM-store
    # bound so the extra VPU work is free filler, and the single dense (R, W)
    # store is fully lane-dense for production P (3P >= 384 for P >= 128).
    px = ox + z * dx
    py = oy + z * dy
    pz = oz + z * dz
    out = jnp.where(comp < 0.5, px, jnp.where(comp < 1.5, py, pz))
    pts_ref[...] = out.astype(pts_ref.dtype)


def _pick_block_rows(n_rays, n_out_lanes, itemsize, vmem_budget_bytes=10 * 1024 * 1024):
    """Ray-block size sized to a double-buffered VMEM budget (safe on v5e/v6e/v7x)."""
    w_pad = _round_up(n_out_lanes, 128)          # output lanes, padded to vreg lanes
    per_row = 2 * w_pad * itemsize + 2 * 128 * itemsize   # dbl-buffered out + padded in
    r = vmem_budget_bytes // per_row
    r = max(8, min(2048, (r // 8) * 8))          # sublane-aligned, capped
    r = min(r, _round_up(n_rays, 8))             # don't over-pad tiny ray counts
    return r


def stratified_raysampler(origins, directions, *, n_pts_per_ray, min_depth,
                          max_depth, materialize_lengths=False):
    """Returns (sample_points (N*P, 3), sample_lengths).

    sample_lengths is the compact (P,) z_vals by default (every one of the
    N*P rows of the torch module's output equals this vector); pass
    materialize_lengths=True to get the full (N*P, P) broadcast.
    """
    assert origins.shape == directions.shape and origins.shape[-1] == 3
    N = origins.shape[0]
    P = n_pts_per_ray
    W = 3 * P
    dtype = origins.dtype
    itemsize = jnp.dtype(dtype).itemsize

    # Merge origins/directions: one DMA descriptor + one lane-padded VMEM
    # buffer per grid step instead of two. Inputs are tiny vs. the output.
    od = jnp.concatenate([origins, directions], axis=-1)   # (N, 6)

    R = _pick_block_rows(N, W, itemsize)
    n_pad = _round_up(N, R)
    if n_pad != N:
        od = jnp.pad(od, ((0, n_pad - N), (0, 0)))
    grid = (n_pad // R,)

    kernel = functools.partial(
        _sampler_kernel, n_pts=P, min_depth=float(min_depth), max_depth=float(max_depth)
    )

    pts_rows = pl.pallas_call(
        kernel,
        out_shape=jax.ShapeDtypeStruct((n_pad, W), dtype),
        grid=grid,
        in_specs=[pl.BlockSpec((R, 6), lambda i: (i, 0))],
        out_specs=pl.BlockSpec((R, W), lambda i: (i, 0)),
        compiler_params=pltpu.CompilerParams(
            dimension_semantics=("parallel",),
            vmem_limit_bytes=32 * 1024 * 1024,
        ),
    )(od)

    if n_pad != N:
        pts_rows = pts_rows[:N]
    # (N, 3P) -> (N*P, 3): contiguous reshape, no data movement.
    sample_points = pts_rows.reshape(N * P, 3)

    z_vals = jnp.linspace(min_depth, max_depth, P, dtype=dtype)
    if materialize_lengths:
        sample_lengths = jnp.broadcast_to(z_vals[None, :], (N * P, P))
    else:
        sample_lengths = z_vals
    return sample_points, sample_lengths


def _reference(origins, directions, n_pts_per_ray, min_depth, max_depth):
    z = jnp.linspace(min_depth, max_depth, n_pts_per_ray, dtype=origins.dtype)
    pts = origins[:, None, :] + z[None, :, None] * directions[:, None, :]
    pts = pts.reshape(-1, 3)
    lens = z * jnp.ones_like(pts[..., :1])
    return pts, lens


if __name__ == "__main__":
    # Small, deterministic example "ray bundle": 8 rays, 16 samples per ray.
    N = 8
    P = 16
    MIN_DEPTH, MAX_DEPTH = 2.0, 6.0

    key = jax.random.PRNGKey(0)
    k_o, k_d = jax.random.split(key)
    origins = jax.random.normal(k_o, (N, 3), dtype=jnp.float32)
    directions = jax.random.normal(k_d, (N, 3), dtype=jnp.float32)
    directions = directions / jnp.linalg.norm(directions, axis=-1, keepdims=True)

    pts, lens = stratified_raysampler(
        origins, directions,
        n_pts_per_ray=P, min_depth=MIN_DEPTH, max_depth=MAX_DEPTH,
        materialize_lengths=True,   # tiny demo shapes; default is the compact (P,) z_vals
    )
    jax.block_until_ready((pts, lens))

    ref_pts, ref_lens = _reference(origins, directions, P, MIN_DEPTH, MAX_DEPTH)
    assert pts.shape == (N * P, 3) and lens.shape == (N * P, P)
    assert jnp.allclose(pts, ref_pts, atol=1e-5, rtol=1e-5)
    assert jnp.allclose(lens, ref_lens, atol=1e-5, rtol=1e-5)

    print("KERNEL_OK")
</pallas_src>

<mosaic_0001>
module attributes {stable_mosaic.version = 11 : i64} {
  func.func @_sampler_kernel(%arg0: i32, %arg1: memref<8x6xf32, #tpu.memory_space<vmem>>, %arg2: memref<8x48xf32, #tpu.memory_space<vmem>>) attributes {dimension_semantics = [#tpu.dimension_semantics<parallel>], iteration_bounds = array<i64: 1>, scalar_prefetch = 0 : i64, scratch_operands = 0 : i64, tpu.core_type = #tpu.core_type<tc>, window_params = [{transform_indices = @transform_0, window_bounds = array<i64: 8, 6>}, {transform_indices = @transform_1, window_bounds = array<i64: 8, 48>}]} {
    %0 = tpu.iota {dimensions = array<i32: 1>} : vector<1x48xi32>
    %1 = arith.sitofp %0 : vector<1x48xi32> to vector<1x48xf32>
    %cst = arith.constant 3.000000e+00 : f32
    %2 = vector.broadcast %cst : f32 to vector<1x48xf32>
    %3 = arith.divf %1, %2 : vector<1x48xf32>
    %4 = math.floor %3 : vector<1x48xf32>
    %cst_0 = arith.constant 3.000000e+00 : f32
    %5 = vector.broadcast %cst_0 : f32 to vector<1x48xf32>
    %6 = arith.mulf %5, %4 : vector<1x48xf32>
    %7 = arith.subf %1, %6 : vector<1x48xf32>
    %cst_1 = arith.constant 0.266666681 : f32
    %8 = vector.broadcast %cst_1 : f32 to vector<1x48xf32>
    %9 = arith.mulf %8, %4 : vector<1x48xf32>
    %cst_2 = arith.constant 2.000000e+00 : f32
    %10 = vector.broadcast %cst_2 : f32 to vector<1x48xf32>
    %11 = arith.addf %10, %9 : vector<1x48xf32>
    %c0 = arith.constant 0 : index
    %c0_3 = arith.constant 0 : index
    %12 = vector.load %arg1[%c0, %c0_3] : memref<8x6xf32, #tpu.memory_space<vmem>>, vector<8x6xf32>
    %13 = vector.extract_strided_slice %12 {offsets = [0, 0], sizes = [8, 1], strides = [1, 1]} : vector<8x6xf32> to vector<8x1xf32>
    %14 = vector.extract_strided_slice %12 {offsets = [0, 1], sizes = [8, 1], strides = [1, 1]} : vector<8x6xf32> to vector<8x1xf32>
    %15 = vector.extract_strided_slice %12 {offsets = [0, 2], sizes = [8, 1], strides = [1, 1]} : vector<8x6xf32> to vector<8x1xf32>
    %16 = vector.extract_strided_slice %12 {offsets = [0, 3], sizes = [8, 1], strides = [1, 1]} : vector<8x6xf32> to vector<8x1xf32>
    %17 = vector.extract_strided_slice %12 {offsets = [0, 4], sizes = [8, 1], strides = [1, 1]} : vector<8x6xf32> to vector<8x1xf32>
    %18 = vector.extract_strided_slice %12 {offsets = [0, 5], sizes = [8, 1], strides = [1, 1]} : vector<8x6xf32> to vector<8x1xf32>
    %19 = vector.broadcast %11 : vector<1x48xf32> to vector<8x48xf32>
    %20 = vector.broadcast %16 : vector<8x1xf32> to vector<8x48xf32>
    %21 = arith.mulf %19, %20 : vector<8x48xf32>
    %22 = vector.broadcast %13 : vector<8x1xf32> to vector<8x48xf32>
    %23 = arith.addf %22, %21 : vector<8x48xf32>
    %24 = vector.broadcast %11 : vector<1x48xf32> to vector<8x48xf32>
    %25 = vector.broadcast %17 : vector<8x1xf32> to vector<8x48xf32>
    %26 = arith.mulf %24, %25 : vector<8x48xf32>
    %27 = vector.broadcast %14 : vector<8x1xf32> to vector<8x48xf32>
    %28 = arith.addf %27, %26 : vector<8x48xf32>
    %29 = vector.broadcast %11 : vector<1x48xf32> to vector<8x48xf32>
    %30 = vector.broadcast %18 : vector<8x1xf32> to vector<8x48xf32>
    %31 = arith.mulf %29, %30 : vector<8x48xf32>
    %32 = vector.broadcast %15 : vector<8x1xf32> to vector<8x48xf32>
    %33 = arith.addf %32, %31 : vector<8x48xf32>
    %cst_4 = arith.constant 5.000000e-01 : f32
    %34 = vector.broadcast %cst_4 : f32 to vector<1x48xf32>
    %35 = arith.cmpf olt, %7, %34 : vector<1x48xf32>
    %cst_5 = arith.constant 1.500000e+00 : f32
    %36 = vector.broadcast %cst_5 : f32 to vector<1x48xf32>
    %37 = arith.cmpf olt, %7, %36 : vector<1x48xf32>
    %38 = vector.shape_cast %37 : vector<1x48xi1> to vector<1x48xi1>
    %39 = vector.broadcast %38 : vector<1x48xi1> to vector<8x48xi1>
    %40 = arith.select %39, %28, %33 : vector<8x48xi1>, vector<8x48xf32>
    %41 = vector.shape_cast %35 : vector<1x48xi1> to vector<1x48xi1>
    %42 = vector.broadcast %41 : vector<1x48xi1> to vector<8x48xi1>
    %43 = arith.select %42, %23, %40 : vector<8x48xi1>, vector<8x48xf32>
    %c0_6 = arith.constant 0 : index
    %c0_7 = arith.constant 0 : index
    %44 = vector.load %arg2[%c0_6, %c0_7] : memref<8x48xf32, #tpu.memory_space<vmem>>, vector<8x48xf32>
    tpu.vector_store %arg2[%c0_6, %c0_7], %43 {strides = array<i32>} : memref<8x48xf32, #tpu.memory_space<vmem>>, vector<8x48xf32>,
    return
  }
  func.func @transform_0(%arg0: i32) -> (i32, i32) {
    %c0_i32 = arith.constant 0 : i32
    %c0_i32_0 = arith.constant 0 : i32
    return %arg0, %c0_i32 : i32, i32
  }
  func.func @transform_1(%arg0: i32) -> (i32, i32) {
    %c0_i32 = arith.constant 0 : i32
    %c0_i32_0 = arith.constant 0 : i32
    return %arg0, %c0_i32 : i32, i32
  }
}

</mosaic_0001>

<llo_original>
// kernel: tpu_custom_call.1
$region0: #{tpu_custom_call.1}
  #allocation0 [shape = 'u32[]', space=smem, size = 0x4, offset = 0x4, fixed_abs, tag = 'smem constant byte address 0x4 - core index']
  #allocation1 [shape = 'u32[144,128]{1,0:T(1,128)}', space=vmem, size = 0x12000, scoped, tag = 'internal scratch']
  %s0 = inlined_call_operand.hbm [shape: f32[8,6], index: 0, kind: input, shape index: {}]
  %s1 = inlined_call_operand.hbm [shape: f32[8,48], index: 1, kind: output, shape index: {}]
  %s2 = sld [smem:[#allocation0]]
  $region18: #{tpu_custom_call.1} parent=0
    _
  %s4 = ssub.s32 1, %s2
  %s5 = scalar_select 0, %s4, %s2
  $region1: #{tpu_custom_call.1} parent=0
    #allocation2 [shape = 'u8[4096]{0}', space=vmem, size = 0x1000, scoped, tag = 'input window, operand 0, single buffered']
    #allocation3 [shape = 's32[1]{0}', space=sflag, size = 0x4, scoped, tag = 'scoped memory for tpu_custom_call.1']
    #allocation4 [shape = 's32[1]{0}', space=sflag, size = 0x4, scoped, tag = 'scoped memory for tpu_custom_call.1']
    #allocation5 [shape = 'u8[4096]{0}', space=vmem, size = 0x1000, scoped, tag = 'output window, operand 0, single buffered']
    %6 = vsyncpa [#allocation3], 0
    %7 = vsyncpa [#allocation4], 0
    // Predicated region
    $region2: #{tpu_custom_call.1} parent=1 // pred_check
      _
    $region3: #{tpu_custom_call.1} parent=1 // pred_check_branch
      %9 = sbr.rel (0) target = $region5
    $region4: #{tpu_custom_call.1} parent=1 // pred_region
      %s11 = ssub.s32 128, 128
      %12 = vsyncadd [#allocation3], %s11
      %s14 = sshll.u32 [#allocation2], 4
      %s15 = int_to_ptr.vmem [resolvable:$true] %s14
      %17 = dma.hbm_to_vmem [thread:$0]  %s0, 128, %s15, [#allocation3]
    $region5: #{tpu_custom_call.1} parent=1 // pred_fallthru
      _
    // Predicated region
    $region6: #{tpu_custom_call.1} parent=1 // pred_check
      _
    $region7: #{tpu_custom_call.1} parent=1 // pred_check_branch
      %19 = sbr.rel (0) target = $region9
    $region8: #{tpu_custom_call.1} parent=1 // pred_region
      %20 = dma.done [#allocation3], 128
    $region9: #{tpu_custom_call.1} parent=1 // pred_fallthru
      _
    %v21 = vlaneseq
    %v22 = vand.u32 %v21, 127
    %v23 = vcvt.s32.f32 %v22
    %v24 = vrcp.pop 3.0
    %v25 = vmul.f32 %v23, %v24
    %v26 = vfloor.f32 %v25
    %v27 = vmul.f32 %v26, 3.0
    %v28 = vsub.f32 %v23, %v27
    %v29 = vmul.f32 %v26, 0.26666668
    %v30 = vadd.f32 %v29, 2.0
    %v31 = vld [vmem:[#allocation2] sm:$0xff]
    %33 = vset.pattern.permute.xlu0 3
    %34 = vperm.xlu0 %33, %v31
    %v35 = vpop.permute.xlu0 %34
    %v37 = vmul.f32 %v30, %v35
    %38 = vset.pattern.permute.xlu0 0
    %39 = vperm.xlu0 %38, %v31
    %v40 = vpop.permute.xlu0 %39
    %v42 = vadd.f32 %v40, %v37
    %43 = vset.pattern.permute.xlu0 4
    %44 = vperm.xlu0 %43, %v31
    %v45 = vpop.permute.xlu0 %44
    %v47 = vmul.f32 %v30, %v45
    %48 = vset.pattern.permute.xlu0 1
    %49 = vperm.xlu0 %48, %v31
    %v50 = vpop.permute.xlu0 %49
    %v52 = vadd.f32 %v50, %v47
    %53 = vset.pattern.permute.xlu0 5
    %54 = vperm.xlu0 %53, %v31
    %v55 = vpop.permute.xlu0 %54
    %v57 = vmul.f32 %v30, %v55
    %58 = vset.pattern.permute.xlu0 2
    %59 = vperm.xlu0 %58, %v31
    %v60 = vpop.permute.xlu0 %59
    %v62 = vadd.f32 %v60, %v57
    %vm63 = vcmp.lt.f32.partialorder %v28, 0.5
    %vm64 = vcmp.lt.f32.partialorder %v28, 1.5
    %v65 = vsel %vm64, 1, 0
    %vm66 = vcmp.eq.s32.totalorder %v65, 1
    %v67 = vsel %vm66, %v52, %v62
    %v68 = vsel %vm63, 1, 0
    %vm69 = vcmp.eq.s32.totalorder %v68, 1
    %v70 = vsel %vm69, %v42, %v67
    %vm71 = vcmask 392192
    %72 = vst.msk [vmem:[#allocation5] sm:$0xff] %vm71, %v70
    // Predicated region
    $region10: #{tpu_custom_call.1} parent=1 // pred_check
      _
    $region11: #{tpu_custom_call.1} parent=1 // pred_check_branch
      %74 = sbr.rel (0) target = $region13
    $region12: #{tpu_custom_call.1} parent=1 // pred_region
      %s76 = ssub.s32 128, 128
      %77 = vsyncadd [#allocation4], %s76
      %s79 = sshll.u32 [#allocation5], 4
      %s80 = int_to_ptr.vmem [resolvable:$true] %s79
      %82 = dma.vmem_to_hbm [thread:$0]  %s80, 128, %s1, [#allocation4]
    $region13: #{tpu_custom_call.1} parent=1 // pred_fallthru
      _
    // Predicated region
    $region14: #{tpu_custom_call.1} parent=1 // pred_check
      _
    $region15: #{tpu_custom_call.1} parent=1 // pred_check_branch
      %84 = sbr.rel (0) target = $region17
    $region16: #{tpu_custom_call.1} parent=1 // pred_region
      %85 = dma.done [#allocation4], 128
    $region17: #{tpu_custom_call.1} parent=1 // pred_fallthru
      _
    %86 = vsyncpa [#allocation3], 1
    %87 = vsyncpa [#allocation4], 1

</llo_original>
